<compile_context>
chip_gen: v7x
topology: tpu7x:2x2x1
jax: 0.10.0
libtpu: 0.0.40
codegen_flags: <defaults>
</compile_context>

<pallas_src>
import math

import jax
import jax.numpy as jnp
from jax.experimental import pallas as pl
from jax.experimental.pallas import tpu as pltpu


def _bias_add_kernel(x_ref, bias_ref, o_ref):
    # x_ref / bias_ref / o_ref: (TB, W) lane-dense blocks in VMEM.
    # bias block is identical every grid step (resident); the add is a plain
    # aligned vreg add with zero reshuffling.
    o_ref[...] = x_ref[...] + bias_ref[...]


def _lane_dense_view(B, FN):
    """Pick a 2-D (rows, width) view of the (B, FN) slab whose last dim is a
    multiple of 128 (lane-dense) when possible. Returns (rows, width, fold)
    where `fold` batch rows are packed into each slab row."""
    if FN % 128 == 0:
        return B, FN, 1
    fold = math.lcm(FN, 128) // FN
    if B % fold == 0:
        return B // fold, FN * fold, fold
    # Fallback: correct, but last dim < 128 -> masked stores.
    return B, FN, 1


def readout_forward(x, bias, *, nodes, F_out, use_bias=True):
    """JAX/Pallas equivalent of Readout.forward.

    x: any array whose total size is divisible by F_out * nodes
       (mirrors torch reshape(-1, F_out, nodes)).
    bias: (F_out, nodes) or None.
    Returns: (B, F_out, nodes) array.
    """
    # _apply_weight is identity; the reshape is metadata-only glue.
    x3 = jnp.reshape(x, (-1, F_out, nodes))
    if not use_bias or bias is None:
        # Identity path: no kernel, no redundant HBM copy.
        return x3

    B = x3.shape[0]
    FN = F_out * nodes

    # PyTorch-style type promotion (never downcast the bias silently).
    out_dtype = jnp.promote_types(x3.dtype, bias.dtype)

    # Lane-dense 2-D view of the data.
    rows, width, fold = _lane_dense_view(B, FN)
    x2d = x3.reshape(rows, width).astype(out_dtype)

    # Tile the bias once in the wrapper so the kernel sees a block with the
    # exact same shape as the x block.
    bias_row = bias.reshape(-1).astype(out_dtype)
    if fold > 1:
        bias_row = jnp.tile(bias_row, fold)  # length == width

    # Row-tile size: target ~2 MiB per block. Double-buffered x/out blocks plus
    # the resident bias block stay well inside v5e's 16 MiB scoped-VMEM default
    # and v7x's 64 MiB physical VMEM.
    itemsize = jnp.dtype(out_dtype).itemsize
    target_bytes = 2 * 1024 * 1024
    tb = max(1, min(rows, target_bytes // max(1, width * itemsize)))
    if tb < rows:
        # Keep the (8, 128) block-tiling constraint legal for partial-row tiles.
        tb = max(8, (tb // 8) * 8)
        tb = min(tb, rows)

    bias_slab = jnp.broadcast_to(bias_row[None, :], (tb, width))

    grid = (pl.cdiv(rows, tb),)
    out2d = pl.pallas_call(
        _bias_add_kernel,
        out_shape=jax.ShapeDtypeStruct((rows, width), out_dtype),
        grid_spec=pl.GridSpec(
            grid=grid,
            in_specs=[
                pl.BlockSpec((tb, width), lambda i: (i, 0)),  # x row-tiles
                pl.BlockSpec((tb, width), lambda i: (0, 0)),  # resident bias
            ],
            out_specs=pl.BlockSpec((tb, width), lambda i: (i, 0)),
        ),
        compiler_params=pltpu.CompilerParams(
            # Bandwidth-bound: let the batch-tile axis shard across v7x's 2 TCs.
            dimension_semantics=("parallel",),
            vmem_limit_bytes=32 * 1024 * 1024,
        ),
    )(x2d, bias_slab)

    return out2d.reshape(B, F_out, nodes)


if __name__ == "__main__":
    # Small shapes consistent with the module: nodes=16, F_out=4, batch=2.
    nodes, F_out, B = 16, 4, 2

    key = jax.random.PRNGKey(0)
    kx, kb = jax.random.split(key)

    # Input in the "pre-reshape" form the torch module would accept, e.g.
    # (B, F_out * nodes); forward reshapes it to (B, F_out, nodes).
    x = jax.random.normal(kx, (B, F_out * nodes), dtype=jnp.float32)

    # Deterministic parameter init (torch.nn.Parameter(torch.empty(F_out, nodes)))
    bias = jax.random.normal(kb, (F_out, nodes), dtype=jnp.float32)

    out = readout_forward(x, bias, nodes=nodes, F_out=F_out, use_bias=True)
    out = jax.block_until_ready(out)

    # Reference check against plain JAX (same semantics as the torch module).
    ref = x.reshape(-1, F_out, nodes) + bias
    assert out.shape == (B, F_out, nodes)
    assert out.dtype == ref.dtype
    assert jnp.allclose(out, ref, atol=1e-6), "mismatch vs reference (bias path)"

    # No-bias (identity) path: must be a pure reshape, no kernel.
    out_id = readout_forward(x, None, nodes=nodes, F_out=F_out, use_bias=False)
    out_id = jax.block_until_ready(out_id)
    assert jnp.allclose(out_id, x.reshape(-1, F_out, nodes)), "identity path mismatch"

    print("KERNEL_OK")
</pallas_src>

<mosaic_0001>
module attributes {stable_mosaic.version = 11 : i64} {
  func.func @_bias_add_kernel(%arg0: i32, %arg1: memref<1x128xf32, #tpu.memory_space<vmem>>, %arg2: memref<1x128xf32, #tpu.memory_space<vmem>>, %arg3: memref<1x128xf32, #tpu.memory_space<vmem>>) attributes {dimension_semantics = [#tpu.dimension_semantics<parallel>], iteration_bounds = array<i64: 1>, scalar_prefetch = 0 : i64, scratch_operands = 0 : i64, tpu.core_type = #tpu.core_type<tc>, window_params = [{transform_indices = @transform_0, window_bounds = array<i64: 1, 128>}, {pipeline_mode = #tpu.pipeline_mode<synchronous>, transform_indices = @transform_1, window_bounds = array<i64: 1, 128>}, {transform_indices = @transform_2, window_bounds = array<i64: 1, 128>}]} {
    %c0 = arith.constant 0 : index
    %c0_0 = arith.constant 0 : index
    %0 = vector.load %arg1[%c0, %c0_0] : memref<1x128xf32, #tpu.memory_space<vmem>>, vector<1x128xf32>
    %c0_1 = arith.constant 0 : index
    %c0_2 = arith.constant 0 : index
    %1 = vector.load %arg2[%c0_1, %c0_2] : memref<1x128xf32, #tpu.memory_space<vmem>>, vector<1x128xf32>
    %2 = arith.addf %0, %1 : vector<1x128xf32>
    %c0_3 = arith.constant 0 : index
    %c0_4 = arith.constant 0 : index
    %3 = vector.load %arg3[%c0_3, %c0_4] : memref<1x128xf32, #tpu.memory_space<vmem>>, vector<1x128xf32>
    tpu.vector_store %arg3[%c0_3, %c0_4], %2 {strides = array<i32>} : memref<1x128xf32, #tpu.memory_space<vmem>>, vector<1x128xf32>,
    return
  }
  func.func @transform_0(%arg0: i32) -> (i32, i32) {
    %c0_i32 = arith.constant 0 : i32
    %c0_i32_0 = arith.constant 0 : i32
    return %arg0, %c0_i32 : i32, i32
  }
  func.func @transform_1(%arg0: i32) -> (i32, i32) {
    %c0_i32 = arith.constant 0 : i32
    %c0_i32_0 = arith.constant 0 : i32
    %c0_i32_1 = arith.constant 0 : i32
    return %c0_i32, %c0_i32_0 : i32, i32
  }
  func.func @transform_2(%arg0: i32) -> (i32, i32) {
    %c0_i32 = arith.constant 0 : i32
    %c0_i32_0 = arith.constant 0 : i32
    return %arg0, %c0_i32 : i32, i32
  }
}

</mosaic_0001>

<llo_original>
// kernel: tpu_custom_call.1
$region0: #{tpu_custom_call.1}
  #allocation0 [shape = 'u32[]', space=smem, size = 0x4, offset = 0x4, fixed_abs, tag = 'smem constant byte address 0x4 - core index']
  #allocation1 [shape = 'u32[144,128]{1,0:T(1,128)}', space=vmem, size = 0x12000, scoped, tag = 'internal scratch']
  %s0 = inlined_call_operand.hbm [shape: f32[1,128], index: 0, kind: input, shape index: {}]
  %s1 = inlined_call_operand.vmem [shape: f32[1,128], index: 1, kind: input, shape index: {}]
  %s2 = inlined_call_operand.hbm [shape: f32[1,128], index: 2, kind: output, shape index: {}]
  %s3 = sld [smem:[#allocation0]]
  $region22: #{tpu_custom_call.1} parent=0
    _
  %s5 = ssub.s32 1, %s3
  %s6 = scalar_select 0, %s5, %s3
  $region1: #{tpu_custom_call.1} parent=0
    #allocation2 [shape = 'u8[512]{0}', space=vmem, size = 0x400, scoped, tag = 'input window, operand 0, single buffered']
    #allocation3 [shape = 's32[1]{0}', space=sflag, size = 0x4, scoped, tag = 'scoped memory for tpu_custom_call.1']
    #allocation4 [shape = 's32[1]{0}', space=sflag, size = 0x4, scoped, tag = 'scoped memory for tpu_custom_call.1']
    #allocation5 [shape = 'u8[512]{0}', space=vmem, size = 0x400, scoped, tag = 'output window, operand 0, single buffered']
    %7 = vsyncpa [#allocation3], 0
    %8 = vsyncpa [#allocation4], 0
    // Predicated region
    $region2: #{tpu_custom_call.1} parent=1 // pred_check
      _
    $region3: #{tpu_custom_call.1} parent=1 // pred_check_branch
      %10 = sbr.rel (0) target = $region5
    $region4: #{tpu_custom_call.1} parent=1 // pred_region
      %s12 = ssub.s32 16, 16
      %13 = vsyncadd [#allocation3], %s12
      %s15 = sshll.u32 [#allocation2], 4
      %s16 = int_to_ptr.vmem [resolvable:$true] %s15
      %18 = dma.hbm_to_vmem [thread:$0]  %s0, 16, %s16, [#allocation3]
    $region5: #{tpu_custom_call.1} parent=1 // pred_fallthru
      _
    // Predicated region
    $region6: #{tpu_custom_call.1} parent=1 // pred_check
      _
    $region7: #{tpu_custom_call.1} parent=1 // pred_check_branch
      %20 = sbr.rel (0) target = $region9
    $region8: #{tpu_custom_call.1} parent=1 // pred_region
      _
    $region9: #{tpu_custom_call.1} parent=1 // pred_fallthru
      _
    // Predicated region
    $region10: #{tpu_custom_call.1} parent=1 // pred_check
      _
    $region11: #{tpu_custom_call.1} parent=1 // pred_check_branch
      %22 = sbr.rel (0) target = $region13
    $region12: #{tpu_custom_call.1} parent=1 // pred_region
      %23 = dma.done [#allocation3], 16
    $region13: #{tpu_custom_call.1} parent=1 // pred_fallthru
      _
    %v24 = vld [vmem:[#allocation2] sm:$0x1]
    %v25 = vld [vmem:[%s1] sm:$0x1]
    %v26 = vadd.f32 %v24, %v25
    %27 = vst [vmem:[#allocation5] sm:$0x1] %v26
    // Predicated region
    $region14: #{tpu_custom_call.1} parent=1 // pred_check
      _
    $region15: #{tpu_custom_call.1} parent=1 // pred_check_branch
      %29 = sbr.rel (0) target = $region17
    $region16: #{tpu_custom_call.1} parent=1 // pred_region
      %s31 = ssub.s32 16, 16
      %32 = vsyncadd [#allocation4], %s31
      %s34 = sshll.u32 [#allocation5], 4
      %s35 = int_to_ptr.vmem [resolvable:$true] %s34
      %37 = dma.vmem_to_hbm [thread:$0]  %s35, 16, %s2, [#allocation4]
    $region17: #{tpu_custom_call.1} parent=1 // pred_fallthru
      _
    // Predicated region
    $region18: #{tpu_custom_call.1} parent=1 // pred_check
      _
    $region19: #{tpu_custom_call.1} parent=1 // pred_check_branch
      %39 = sbr.rel (0) target = $region21
    $region20: #{tpu_custom_call.1} parent=1 // pred_region
      %40 = dma.done [#allocation4], 16
    $region21: #{tpu_custom_call.1} parent=1 // pred_fallthru
      _
    %41 = vsyncpa [#allocation3], 1
    %42 = vsyncpa [#allocation4], 1

</llo_original>
